<compile_context>
chip_gen: v7x
topology: tpu7x:2x2x1
jax: 0.10.0
libtpu: 0.0.40
codegen_flags: <defaults>
</compile_context>

<pallas_src>
import math

import jax
import jax.numpy as jnp
from jax.experimental import pallas as pl
from jax.experimental.pallas import tpu as pltpu

HIDDEN = 128
_DEFAULT_BATCH_TILE = 1024  # rows; multiple of 128 (lane-dense output block)


def _condition_net_kernel(x_ref, y_ref, w1x_ref, w1y_ref, b1_ref, w2_ref,
                          b2_ref, out_ref):
    """One batch-tile of the ConditionNet forward.

    x_ref  : (TB, Din)    x_t tile
    y_ref  : (TB, Dcond)  y_condition tile
    w1x_ref: (Din, 128)   fc1 weight rows matching x_t
    w1y_ref: (Dcond, 128) fc1 weight rows matching y_condition
    b1_ref : (1, 128)     fc1 bias
    w2_ref : (1, 128)     fc2 weight (row vector)
    b2_ref : (1, 1)       fc2 bias
    out_ref: (1, TB)      log_p row tile (batch on the lane axis)
    """
    # fc1 over the "virtual concat": xc @ W1 == x @ W1x + y @ W1y  (MXU, f32 acc)
    h = (jnp.dot(x_ref[...], w1x_ref[...], preferred_element_type=jnp.float32)
         + jnp.dot(y_ref[...], w1y_ref[...], preferred_element_type=jnp.float32)
         + b1_ref[...])
    h = jnp.maximum(h, 0.0)                                   # (TB, 128), f32

    # fc2 as w2 (1,128) contracted against h's hidden axis (A @ B^T pattern)
    # -> lane-dense (1, TB) result row; avoids the N=1 matmul + masked stores.
    log_p = jax.lax.dot_general(
        w2_ref[...], h,
        dimension_numbers=(((1,), (1,)), ((), ())),
        preferred_element_type=jnp.float32)                   # (1, TB)
    out_ref[...] = (log_p + b2_ref[...]).astype(out_ref.dtype)


def condition_net_forward(x_t, y_condition, params, *, batch_tile=None,
                          compute_dtype=jnp.float32):
    """Pallas-backed ConditionNet forward.

    x_t:         (B, input_dim)      float32
    y_condition: (B, condition_dim)  float32
    params: dict with w1 (Din+Dcond, 128), b1 (128,), w2 (128, 1), b2 (1,)
    compute_dtype: dtype for activations/W1 fed to the MXU (bf16 halves HBM
                   traffic on v6e/v7x; accumulation stays f32 either way).
    returns (B, 1) float32
    """
    B, din = x_t.shape
    _, dcond = y_condition.shape
    dtot = din + dcond

    # --- choose / validate batch tile --------------------------------------
    tb = batch_tile if batch_tile is not None else (
        B if B <= _DEFAULT_BATCH_TILE else _DEFAULT_BATCH_TILE)
    b_pad = pl.cdiv(B, tb) * tb
    if tb < b_pad and tb % 128 != 0:
        raise ValueError(
            f"batch_tile={tb} must be a multiple of 128 when it tiles the "
            f"batch (lane-dense output block), or cover the whole batch.")

    # --- prepare operands (weights are tiny; slicing/reshaping them is free) -
    x = x_t.astype(compute_dtype)
    y = y_condition.astype(compute_dtype)
    w1 = params["w1"]
    w1x = w1[:din].astype(compute_dtype)                    # (Din, 128)
    w1y = w1[din:].astype(compute_dtype)                    # (Dcond, 128)
    b1 = params["b1"].reshape(1, HIDDEN).astype(jnp.float32)
    w2 = params["w2"].reshape(1, HIDDEN).astype(jnp.float32)  # row vector
    b2 = params["b2"].reshape(1, 1).astype(jnp.float32)

    if b_pad != B:  # pad awkward batch sizes up to the tile (rows of zeros)
        x = jnp.pad(x, ((0, b_pad - B), (0, 0)))
        y = jnp.pad(y, ((0, b_pad - B), (0, 0)))

    grid = (b_pad // tb,)

    itemsize = jnp.dtype(compute_dtype).itemsize
    cost = pl.CostEstimate(
        flops=2 * b_pad * dtot * HIDDEN + 2 * b_pad * HIDDEN,
        transcendentals=0,
        bytes_accessed=(b_pad * dtot * itemsize          # activations in
                        + dtot * HIDDEN * itemsize       # W1
                        + (2 * HIDDEN + 1) * 4           # b1, w2, b2
                        + b_pad * 4))                    # log_p out

    out_row = pl.pallas_call(
        _condition_net_kernel,
        out_shape=jax.ShapeDtypeStruct((1, b_pad), jnp.float32),
        grid_spec=pltpu.PrefetchScalarGridSpec(
            num_scalar_prefetch=0,
            grid=grid,
            in_specs=[
                pl.BlockSpec((tb, din), lambda i: (i, 0)),        # x_t tile
                pl.BlockSpec((tb, dcond), lambda i: (i, 0)),      # y_cond tile
                pl.BlockSpec((din, HIDDEN), lambda i: (0, 0)),    # W1x (full)
                pl.BlockSpec((dcond, HIDDEN), lambda i: (0, 0)),  # W1y (full)
                pl.BlockSpec((1, HIDDEN), lambda i: (0, 0)),      # b1
                pl.BlockSpec((1, HIDDEN), lambda i: (0, 0)),      # w2 row
                pl.BlockSpec((1, 1), lambda i: (0, 0)),           # b2
            ],
            out_specs=pl.BlockSpec((1, tb), lambda i: (0, i)),    # lane-dense
        ),
        compiler_params=pltpu.CompilerParams(
            dimension_semantics=("parallel",),
            vmem_limit_bytes=32 * 1024 * 1024),
        cost_estimate=cost,
    )(x, y, w1x, w1y, b1, w2, b2)

    # layout plumbing back to the PyTorch output shape (B, 1)
    return out_row[0, :B].reshape(B, 1)


def init_condition_net_params(key, input_dim, condition_dim):
    """Deterministic init mirroring nn.Linear default (uniform +-1/sqrt(fan_in))."""
    dtot = input_dim + condition_dim
    k1, k2, k3, k4 = jax.random.split(key, 4)
    bound1 = 1.0 / math.sqrt(dtot)
    bound2 = 1.0 / math.sqrt(HIDDEN)
    return {
        # stored transposed relative to torch: (in_features, out_features)
        "w1": jax.random.uniform(k1, (dtot, HIDDEN), jnp.float32, -bound1, bound1),
        "b1": jax.random.uniform(k2, (HIDDEN,), jnp.float32, -bound1, bound1),
        "w2": jax.random.uniform(k3, (HIDDEN, 1), jnp.float32, -bound2, bound2),
        "b2": jax.random.uniform(k4, (1,), jnp.float32, -bound2, bound2),
    }


def _reference_forward(x_t, y_condition, params):
    xc = jnp.concatenate([x_t, y_condition], axis=-1)
    h = jnp.maximum(xc @ params["w1"] + params["b1"], 0.0)
    return h @ params["w2"] + params["b2"]


if __name__ == "__main__":
    key = jax.random.PRNGKey(0)
    k_x, k_y, k_p = jax.random.split(key, 3)

    batch = 8
    input_dim = 16
    condition_dim = 8

    x_t = jax.random.normal(k_x, (batch, input_dim), jnp.float32)
    y_condition = jax.random.normal(k_y, (batch, condition_dim), jnp.float32)
    params = init_condition_net_params(k_p, input_dim, condition_dim)

    log_p = condition_net_forward(x_t, y_condition, params)
    log_p = jax.block_until_ready(log_p)

    ref = _reference_forward(x_t, y_condition, params)
    assert log_p.shape == (batch, 1), log_p.shape
    assert jnp.allclose(log_p, ref, atol=1e-5, rtol=1e-5), "mismatch vs reference"

    print("KERNEL_OK")
</pallas_src>

<mosaic_0001>
module attributes {stable_mosaic.version = 11 : i64} {
  func.func @_condition_net_kernel(%arg0: i32, %arg1: memref<8x16xf32, #tpu.memory_space<vmem>>, %arg2: memref<8x8xf32, #tpu.memory_space<vmem>>, %arg3: memref<16x128xf32, #tpu.memory_space<vmem>>, %arg4: memref<8x128xf32, #tpu.memory_space<vmem>>, %arg5: memref<1x128xf32, #tpu.memory_space<vmem>>, %arg6: memref<1x128xf32, #tpu.memory_space<vmem>>, %arg7: memref<1x1xf32, #tpu.memory_space<vmem>>, %arg8: memref<1x8xf32, #tpu.memory_space<vmem>>) attributes {dimension_semantics = [#tpu.dimension_semantics<parallel>], iteration_bounds = array<i64: 1>, scalar_prefetch = 0 : i64, scratch_operands = 0 : i64, tpu.core_type = #tpu.core_type<tc>, window_params = [{transform_indices = @transform_0, window_bounds = array<i64: 8, 16>}, {transform_indices = @transform_1, window_bounds = array<i64: 8, 8>}, {pipeline_mode = #tpu.pipeline_mode<synchronous>, transform_indices = @transform_2, window_bounds = array<i64: 16, 128>}, {pipeline_mode = #tpu.pipeline_mode<synchronous>, transform_indices = @transform_3, window_bounds = array<i64: 8, 128>}, {pipeline_mode = #tpu.pipeline_mode<synchronous>, transform_indices = @transform_4, window_bounds = array<i64: 1, 128>}, {pipeline_mode = #tpu.pipeline_mode<synchronous>, transform_indices = @transform_5, window_bounds = array<i64: 1, 128>}, {pipeline_mode = #tpu.pipeline_mode<synchronous>, transform_indices = @transform_6, window_bounds = array<i64: 1, 1>}, {transform_indices = @transform_7, window_bounds = array<i64: 1, 8>}]} {
    %c0 = arith.constant 0 : index
    %c0_0 = arith.constant 0 : index
    %0 = vector.load %arg1[%c0, %c0_0] : memref<8x16xf32, #tpu.memory_space<vmem>>, vector<8x16xf32>
    %c0_1 = arith.constant 0 : index
    %c0_2 = arith.constant 0 : index
    %1 = vector.load %arg3[%c0_1, %c0_2] : memref<16x128xf32, #tpu.memory_space<vmem>>, vector<16x128xf32>
    %cst = arith.constant dense<0.000000e+00> : vector<8x128xf32>
    %2 = tpu.matmul %0, %1, %cst {dimension_numbers = #tpu.dot_dimension_numbers<[1], [0], [0], [1], [0, 0, 1, 1], [], []>} : vector<8x16xf32>, vector<16x128xf32>, vector<8x128xf32> -> vector<8x128xf32>
    %c0_3 = arith.constant 0 : index
    %c0_4 = arith.constant 0 : index
    %3 = vector.load %arg2[%c0_3, %c0_4] : memref<8x8xf32, #tpu.memory_space<vmem>>, vector<8x8xf32>
    %c0_5 = arith.constant 0 : index
    %c0_6 = arith.constant 0 : index
    %4 = vector.load %arg4[%c0_5, %c0_6] : memref<8x128xf32, #tpu.memory_space<vmem>>, vector<8x128xf32>
    %cst_7 = arith.constant dense<0.000000e+00> : vector<8x128xf32>
    %5 = tpu.matmul %3, %4, %cst_7 {dimension_numbers = #tpu.dot_dimension_numbers<[1], [0], [0], [1], [0, 0, 1, 1], [], []>} : vector<8x8xf32>, vector<8x128xf32>, vector<8x128xf32> -> vector<8x128xf32>
    %6 = arith.addf %2, %5 : vector<8x128xf32>
    %c0_8 = arith.constant 0 : index
    %c0_9 = arith.constant 0 : index
    %7 = vector.load %arg5[%c0_8, %c0_9] : memref<1x128xf32, #tpu.memory_space<vmem>>, vector<1x128xf32>
    %8 = vector.broadcast %7 : vector<1x128xf32> to vector<8x128xf32>
    %9 = arith.addf %6, %8 : vector<8x128xf32>
    %cst_10 = arith.constant 0.000000e+00 : f32
    %10 = vector.broadcast %cst_10 : f32 to vector<8x128xf32>
    %11 = arith.maximumf %9, %10 : vector<8x128xf32>
    %c0_11 = arith.constant 0 : index
    %c0_12 = arith.constant 0 : index
    %12 = vector.load %arg6[%c0_11, %c0_12] : memref<1x128xf32, #tpu.memory_space<vmem>>, vector<1x128xf32>
    %cst_13 = arith.constant dense<0.000000e+00> : vector<1x8xf32>
    %13 = tpu.matmul %12, %11, %cst_13 {dimension_numbers = #tpu.dot_dimension_numbers<[1], [1], [0], [0], [0, 0, 1, 0], [], []>} : vector<1x128xf32>, vector<8x128xf32>, vector<1x8xf32> -> vector<1x8xf32>
    %c0_14 = arith.constant 0 : index
    %c0_15 = arith.constant 0 : index
    %14 = vector.load %arg7[%c0_14, %c0_15] : memref<1x1xf32, #tpu.memory_space<vmem>>, vector<1x1xf32>
    %15 = vector.broadcast %14 : vector<1x1xf32> to vector<1x8xf32>
    %16 = arith.addf %13, %15 : vector<1x8xf32>
    %c0_16 = arith.constant 0 : index
    %c0_17 = arith.constant 0 : index
    %17 = vector.load %arg8[%c0_16, %c0_17] : memref<1x8xf32, #tpu.memory_space<vmem>>, vector<1x8xf32>
    tpu.vector_store %arg8[%c0_16, %c0_17], %16 {strides = array<i32>} : memref<1x8xf32, #tpu.memory_space<vmem>>, vector<1x8xf32>,
    return
  }
  func.func @transform_0(%arg0: i32) -> (i32, i32) {
    %c0_i32 = arith.constant 0 : i32
    %c0_i32_0 = arith.constant 0 : i32
    return %arg0, %c0_i32 : i32, i32
  }
  func.func @transform_1(%arg0: i32) -> (i32, i32) {
    %c0_i32 = arith.constant 0 : i32
    %c0_i32_0 = arith.constant 0 : i32
    return %arg0, %c0_i32 : i32, i32
  }
  func.func @transform_2(%arg0: i32) -> (i32, i32) {
    %c0_i32 = arith.constant 0 : i32
    %c0_i32_0 = arith.constant 0 : i32
    %c0_i32_1 = arith.constant 0 : i32
    return %c0_i32, %c0_i32_0 : i32, i32
  }
  func.func @transform_3(%arg0: i32) -> (i32, i32) {
    %c0_i32 = arith.constant 0 : i32
    %c0_i32_0 = arith.constant 0 : i32
    %c0_i32_1 = arith.constant 0 : i32
    return %c0_i32, %c0_i32_0 : i32, i32
  }
  func.func @transform_4(%arg0: i32) -> (i32, i32) {
    %c0_i32 = arith.constant 0 : i32
    %c0_i32_0 = arith.constant 0 : i32
    %c0_i32_1 = arith.constant 0 : i32
    return %c0_i32, %c0_i32_0 : i32, i32
  }
  func.func @transform_5(%arg0: i32) -> (i32, i32) {
    %c0_i32 = arith.constant 0 : i32
    %c0_i32_0 = arith.constant 0 : i32
    %c0_i32_1 = arith.constant 0 : i32
    return %c0_i32, %c0_i32_0 : i32, i32
  }
  func.func @transform_6(%arg0: i32) -> (i32, i32) {
    %c0_i32 = arith.constant 0 : i32
    %c0_i32_0 = arith.constant 0 : i32
    %c0_i32_1 = arith.constant 0 : i32
    return %c0_i32, %c0_i32_0 : i32, i32
  }
  func.func @transform_7(%arg0: i32) -> (i32, i32) {
    %c0_i32 = arith.constant 0 : i32
    %c0_i32_0 = arith.constant 0 : i32
    return %c0_i32, %arg0 : i32, i32
  }
}

</mosaic_0001>

<llo_original>
// kernel: tpu_custom_call.1
$region0: #{tpu_custom_call.1}
  #allocation0 [shape = 'u32[]', space=smem, size = 0x4, offset = 0x4, fixed_abs, tag = 'smem constant byte address 0x4 - core index']
  #allocation1 [shape = 'u32[144,128]{1,0:T(1,128)}', space=vmem, size = 0x12000, scoped, tag = 'internal scratch']
  #allocation2 [shape = 'f32[1,1]{1,0:T(1,128)S(1)}', space=vmem, size = 0x200, scoped, tag = 'scoped memory for tpu_custom_call.1']
  %s0 = inlined_call_operand.hbm [shape: f32[8,16], index: 0, kind: input, shape index: {}]
  %s1 = inlined_call_operand.hbm [shape: f32[8,8], index: 1, kind: input, shape index: {}]
  %s2 = inlined_call_operand.hbm [shape: f32[16,128], index: 2, kind: input, shape index: {}]
  %s3 = inlined_call_operand.vmem [shape: f32[8,128], index: 3, kind: input, shape index: {}]
  %s4 = inlined_call_operand.vmem [shape: f32[1,128], index: 4, kind: input, shape index: {}]
  %s5 = inlined_call_operand.vmem [shape: f32[1,128], index: 5, kind: input, shape index: {}]
  %s6 = inlined_call_operand.<no memory space> [shape: f32[1,1], index: 6, kind: input, shape index: {}]
  %s7 = inlined_call_operand.hbm [shape: f32[1,8], index: 7, kind: output, shape index: {}]
  %s8 = sld [smem:[#allocation0]]
  $region50: #{tpu_custom_call.1} parent=0
    _
  %s10 = ssub.s32 1, %s8
  %s11 = scalar_select 0, %s10, %s8
  %v12 = vstv %s6
  %13 = vst [vmem:[#allocation2] sm:$0x1] %v12
  $region1: #{tpu_custom_call.1} parent=0
    #allocation3 [shape = 'u8[4096]{0}', space=vmem, size = 0x1000, scoped, tag = 'input window, operand 0, single buffered']
    #allocation4 [shape = 's32[1]{0}', space=sflag, size = 0x4, scoped, tag = 'scoped memory for tpu_custom_call.1']
    #allocation5 [shape = 's32[1]{0}', space=sflag, size = 0x4, scoped, tag = 'scoped memory for tpu_custom_call.1']
    #allocation6 [shape = 'u8[4096]{0}', space=vmem, size = 0x1000, scoped, tag = 'input window, operand 1, single buffered']
    #allocation7 [shape = 's32[1]{0}', space=sflag, size = 0x4, scoped, tag = 'scoped memory for tpu_custom_call.1']
    #allocation8 [shape = 'u8[8192]{0}', space=vmem, size = 0x2000, scoped, tag = 'input window, operand 2, single buffered']
    #allocation9 [shape = 'u8[512]{0}', space=vmem, size = 0x400, scoped, tag = 'output window, operand 0, single buffered']
    %14 = vsyncpa [#allocation4], 0
    %15 = vsyncpa [#allocation7], 0
    %16 = vsyncpa [#allocation5], 0
    // Predicated region
    $region2: #{tpu_custom_call.1} parent=1 // pred_check
      _
    $region3: #{tpu_custom_call.1} parent=1 // pred_check_branch
      %18 = sbr.rel (0) target = $region5
    $region4: #{tpu_custom_call.1} parent=1 // pred_region
      %s20 = ssub.s32 128, 128
      %21 = vsyncadd [#allocation4], %s20
      %s23 = sshll.u32 [#allocation3], 4
      %s24 = int_to_ptr.vmem [resolvable:$true] %s23
      %26 = dma.hbm_to_vmem [thread:$0]  %s0, 128, %s24, [#allocation4]
    $region5: #{tpu_custom_call.1} parent=1 // pred_fallthru
      _
    // Predicated region
    $region6: #{tpu_custom_call.1} parent=1 // pred_check
      _
    $region7: #{tpu_custom_call.1} parent=1 // pred_check_branch
      %28 = sbr.rel (0) target = $region9
    $region8: #{tpu_custom_call.1} parent=1 // pred_region
      %s30 = ssub.s32 128, 128
      %31 = vsyncadd [#allocation7], %s30
      %s33 = sshll.u32 [#allocation6], 4
      %s34 = int_to_ptr.vmem [resolvable:$true] %s33
      %36 = dma.hbm_to_vmem [thread:$0]  %s1, 128, %s34, [#allocation7]
    $region9: #{tpu_custom_call.1} parent=1 // pred_fallthru
      _
    // Predicated region
    $region10: #{tpu_custom_call.1} parent=1 // pred_check
      _
    $region11: #{tpu_custom_call.1} parent=1 // pred_check_branch
      %38 = sbr.rel (0) target = $region13
    $region12: #{tpu_custom_call.1} parent=1 // pred_region
      %s40 = ssub.s32 256, 256
      %41 = vsyncadd [#allocation7], %s40
      %s42 = sshll.u32 [#allocation8], 4
      %s43 = int_to_ptr.vmem [resolvable:$true] %s42
      %48 = dma.hbm_to_vmem [thread:$0]  %s2, 256, %s43, [#allocation7], 128, 128, 8
    $region13: #{tpu_custom_call.1} parent=1 // pred_fallthru
      _
    // Predicated region
    $region14: #{tpu_custom_call.1} parent=1 // pred_check
      _
    $region15: #{tpu_custom_call.1} parent=1 // pred_check_branch
      %50 = sbr.rel (0) target = $region17
    $region16: #{tpu_custom_call.1} parent=1 // pred_region
      _
    $region17: #{tpu_custom_call.1} parent=1 // pred_fallthru
      _
    // Predicated region
    $region18: #{tpu_custom_call.1} parent=1 // pred_check
      _
    $region19: #{tpu_custom_call.1} parent=1 // pred_check_branch
      %52 = sbr.rel (0) target = $region21
    $region20: #{tpu_custom_call.1} parent=1 // pred_region
      _
    $region21: #{tpu_custom_call.1} parent=1 // pred_fallthru
      _
    // Predicated region
    $region22: #{tpu_custom_call.1} parent=1 // pred_check
      _
    $region23: #{tpu_custom_call.1} parent=1 // pred_check_branch
      %54 = sbr.rel (0) target = $region25
    $region24: #{tpu_custom_call.1} parent=1 // pred_region
      _
    $region25: #{tpu_custom_call.1} parent=1 // pred_fallthru
      _
    // Predicated region
    $region26: #{tpu_custom_call.1} parent=1 // pred_check
      _
    $region27: #{tpu_custom_call.1} parent=1 // pred_check_branch
      %56 = sbr.rel (0) target = $region29
    $region28: #{tpu_custom_call.1} parent=1 // pred_region
      _
    $region29: #{tpu_custom_call.1} parent=1 // pred_fallthru
      _
    // Predicated region
    $region30: #{tpu_custom_call.1} parent=1 // pred_check
      _
    $region31: #{tpu_custom_call.1} parent=1 // pred_check_branch
      %58 = sbr.rel (0) target = $region33
    $region32: #{tpu_custom_call.1} parent=1 // pred_region
      %59 = dma.done [#allocation4], 128
    $region33: #{tpu_custom_call.1} parent=1 // pred_fallthru
      _
    // Predicated region
    $region34: #{tpu_custom_call.1} parent=1 // pred_check
      _
    $region35: #{tpu_custom_call.1} parent=1 // pred_check_branch
      %61 = sbr.rel (0) target = $region37
    $region36: #{tpu_custom_call.1} parent=1 // pred_region
      %62 = dma.done [#allocation7], 128
    $region37: #{tpu_custom_call.1} parent=1 // pred_fallthru
      _
    // Predicated region
    $region38: #{tpu_custom_call.1} parent=1 // pred_check
      _
    $region39: #{tpu_custom_call.1} parent=1 // pred_check_branch
      %64 = sbr.rel (0) target = $region41
    $region40: #{tpu_custom_call.1} parent=1 // pred_region
      %65 = dma.done [#allocation7], 256
    $region41: #{tpu_custom_call.1} parent=1 // pred_fallthru
      _
    %v66 = vld [vmem:[#allocation3] sm:$0xff]
    %v67 = vld [vmem:[#allocation8] sm:$0xff]
    %v68 = vld [vmem:[#allocation8 + $0x8] sm:$0xff]
    %v69 = vld [vmem:[#allocation6] sm:$0xff]
    %v70 = vld [vmem:[%s3] sm:$0xff]
    %vm71 = vcmask 64512
    %v73 = vsel %vm71, %v69, 0
    %75 = vmatprep.subr.mxu0 0.0
    %76 = vmatpush1.msra.mxu0 %v70
    %77 = vmatprep.subr.mxu0 0.0
    %78 = vmatpush1.msra.mxu0 0.0
    %79 = vmatprep.subr.mxu0 0.0
    %80 = vmatpush1.msra.mxu0 0.0
    %81 = vmatprep.subr.mxu0 0.0
    %82 = vmatpush1.msra.mxu0 0.0
    %83 = vmatprep.subr.mxu0 0.0
    %84 = vmatpush1.msra.mxu0 0.0
    %85 = vmatprep.subr.mxu0 0.0
    %86 = vmatpush1.msra.mxu0 0.0
    %87 = vmatprep.subr.mxu0 0.0
    %88 = vmatpush1.msra.mxu0 0.0
    %89 = vmatprep.subr.mxu0 0.0
    %90 = vmatpush1.msra.mxu0 0.0
    %91 = vmatprep.subr.mxu0 0.0
    %92 = vmatpush1.msra.mxu0 0.0
    %93 = vmatprep.subr.mxu0 0.0
    %94 = vmatpush1.msra.mxu0 0.0
    %95 = vmatprep.subr.mxu0 0.0
    %96 = vmatpush1.msra.mxu0 0.0
    %97 = vmatprep.subr.mxu0 0.0
    %98 = vmatpush1.msra.mxu0 0.0
    %99 = vmatprep.subr.mxu0 0.0
    %100 = vmatpush1.msra.mxu0 0.0
    %101 = vmatprep.subr.mxu0 0.0
    %102 = vmatpush1.msra.mxu0 0.0
    %103 = vmatprep.subr.mxu0 0.0
    %104 = vmatpush1.msra.mxu0 0.0
    %105 = vmatprep.subr.mxu0 0.0
    %106 = vmatpush1.msra.mxu0 0.0
    %107 = vmatprep.subr.mxu0 0.0
    %108 = vmatpush1.msra.mxu0 0.0
    %109 = vmatprep.subr.mxu0 0.0
    %110 = vmatpush1.msra.mxu0 0.0
    %111 = vmatprep.subr.mxu0 0.0
    %112 = vmatpush1.msra.mxu0 0.0
    %113 = vmatprep.subr.mxu0 0.0
    %114 = vmatpush1.msra.mxu0 0.0
    %115 = vmatprep.subr.mxu0 0.0
    %116 = vmatpush1.msra.mxu0 0.0
    %117 = vmatprep.subr.mxu0 0.0
    %118 = vmatpush1.msra.mxu0 0.0
    %119 = vmatprep.subr.mxu0 0.0
    %120 = vmatpush1.msra.mxu0 0.0
    %121 = vmatprep.subr.mxu0 0.0
    %122 = vmatpush1.msra.mxu0 0.0
    %123 = vmatprep.subr.mxu0 0.0
    %124 = vmatpush1.msra.mxu0 0.0
    %125 = vmatprep.subr.mxu0 0.0
    %126 = vmatpush1.msra.mxu0 0.0
    %127 = vmatprep.subr.mxu0 0.0
    %128 = vmatpush1.msra.mxu0 0.0
    %129 = vmatprep.subr.mxu0 0.0
    %130 = vmatpush1.msra.mxu0 0.0
    %131 = vmatprep.subr.mxu0 0.0
    %132 = vmatpush1.msra.mxu0 0.0
    %133 = vmatprep.subr.mxu0 0.0
    %134 = vmatpush1.msra.mxu0 0.0
    %135 = vmatprep.subr.mxu0 0.0
    %136 = vmatpush1.msra.mxu0 0.0
    %137 = vmatprep.subr.mxu0 0.0
    %138 = vmatpush1.msra.mxu0 0.0
    %139 = vmatprep.mubr.f32.mxu0 0.0
    %140 = vmatmul.mubr.f32.gmra.mrb[0].mxu0 %v73
    %v141 = vpop.f32.mrb[0].mxu0
    %v142 = vadd.f32 0.0, %v141
    %v143 = vpop.f32.mrb[0].mxu0
    %144 = vdwg.mxu0
    %vm145 = vcmask 130048
    %v147 = vsel %vm145, %v66, 0
    %149 = vmatprep.subr.mxu0 0.0
    %150 = vmatpush1.msra.mxu0 %v67
    %151 = vmatprep.subr.mxu0 0.0
    %152 = vmatpush1.msra.mxu0 %v68
    %153 = vmatprep.subr.mxu0 0.0
    %154 = vmatpush1.msra.mxu0 0.0
    %155 = vmatprep.subr.mxu0 0.0
    %156 = vmatpush1.msra.mxu0 0.0
    %157 = vmatprep.subr.mxu0 0.0
    %158 = vmatpush1.msra.mxu0 0.0
    %159 = vmatprep.subr.mxu0 0.0
    %160 = vmatpush1.msra.mxu0 0.0
    %161 = vmatprep.subr.mxu0 0.0
    %162 = vmatpush1.msra.mxu0 0.0
    %163 = vmatprep.subr.mxu0 0.0
    %164 = vmatpush1.msra.mxu0 0.0
    %165 = vmatprep.subr.mxu0 0.0
    %166 = vmatpush1.msra.mxu0 0.0
    %167 = vmatprep.subr.mxu0 0.0
    %168 = vmatpush1.msra.mxu0 0.0
    %169 = vmatprep.subr.mxu0 0.0
    %170 = vmatpush1.msra.mxu0 0.0
    %171 = vmatprep.subr.mxu0 0.0
    %172 = vmatpush1.msra.mxu0 0.0
    %173 = vmatprep.subr.mxu0 0.0
    %174 = vmatpush1.msra.mxu0 0.0
    %175 = vmatprep.subr.mxu0 0.0
    %176 = vmatpush1.msra.mxu0 0.0
    %177 = vmatprep.subr.mxu0 0.0
    %178 = vmatpush1.msra.mxu0 0.0
    %179 = vmatprep.subr.mxu0 0.0
    %180 = vmatpush1.msra.mxu0 0.0
    %181 = vmatprep.subr.mxu0 0.0
    %182 = vmatpush1.msra.mxu0 0.0
    %183 = vmatprep.subr.mxu0 0.0
    %184 = vmatpush1.msra.mxu0 0.0
    %185 = vmatprep.subr.mxu0 0.0
    %186 = vmatpush1.msra.mxu0 0.0
    %187 = vmatprep.subr.mxu0 0.0
    %188 = vmatpush1.msra.mxu0 0.0
    %189 = vmatprep.subr.mxu0 0.0
    %190 = vmatpush1.msra.mxu0 0.0
    %191 = vmatprep.subr.mxu0 0.0
    %192 = vmatpush1.msra.mxu0 0.0
    %193 = vmatprep.subr.mxu0 0.0
    %194 = vmatpush1.msra.mxu0 0.0
    %195 = vmatprep.subr.mxu0 0.0
    %196 = vmatpush1.msra.mxu0 0.0
    %197 = vmatprep.subr.mxu0 0.0
    %198 = vmatpush1.msra.mxu0 0.0
    %199 = vmatprep.subr.mxu0 0.0
    %200 = vmatpush1.msra.mxu0 0.0
    %201 = vmatprep.subr.mxu0 0.0
    %202 = vmatpush1.msra.mxu0 0.0
    %203 = vmatprep.subr.mxu0 0.0
    %204 = vmatpush1.msra.mxu0 0.0
    %205 = vmatprep.subr.mxu0 0.0
    %206 = vmatpush1.msra.mxu0 0.0
    %207 = vmatprep.subr.mxu0 0.0
    %208 = vmatpush1.msra.mxu0 0.0
    %209 = vmatprep.subr.mxu0 0.0
    %210 = vmatpush1.msra.mxu0 0.0
    %211 = vmatprep.subr.mxu0 0.0
    %212 = vmatpush1.msra.mxu0 0.0
    %213 = vmatprep.mubr.f32.mxu0 0.0
    %214 = vmatmul.mubr.f32.gmra.mrb[0].mxu0 %v147
    %v215 = vpop.f32.mrb[0].mxu0
    %v216 = vadd.f32 %v142, %v215
    %v217 = vpop.f32.mrb[0].mxu0
    %218 = vdwg.mxu0
    %v219 = vld [vmem:[%s4] sm:$0x1]
    %v221 = vlaneseq
    %v222 = vshrl.u32 %v221, 7
    %v223 = vsub.s32 0, %v222
    %v224 = vrot.slane %v219, %v223
    %v226 = vadd.f32 %v216, %v224
    %v227 = vmax.f32 %v226, 0.0
    %v228 = vld [vmem:[%s5] sm:$0x1]
    %v229 = vld [vmem:[#allocation2] sm:$0x1]
    %231 = vset.pattern.permute.xlu0 0
    %232 = vperm.xlu0 %231, %v229
    %v233 = vpop.permute.xlu0 %232
    %v235 = vlaneseq
    %v236 = vshrl.u32 %v235, 7
    %v237 = vsub.s32 0, %v236
    %v238 = vrot.slane %v233, %v237
    %239 = vmatprep.subr.mxu0 0.0
    %240 = vmatpush1.xpose.msra.mxu0 %v227
    %241 = vmatprep.subr.mxu0 0.0
    %242 = vmatpush1.xpose.msra.mxu0 0.0
    %243 = vmatprep.subr.mxu0 0.0
    %244 = vmatpush1.xpose.msra.mxu0 0.0
    %245 = vmatprep.subr.mxu0 0.0
    %246 = vmatpush1.xpose.msra.mxu0 0.0
    %247 = vmatprep.subr.mxu0 0.0
    %248 = vmatpush1.xpose.msra.mxu0 0.0
    %249 = vmatprep.subr.mxu0 0.0
    %250 = vmatpush1.xpose.msra.mxu0 0.0
    %251 = vmatprep.subr.mxu0 0.0
    %252 = vmatpush1.xpose.msra.mxu0 0.0
    %253 = vmatprep.subr.mxu0 0.0
    %254 = vmatpush1.xpose.msra.mxu0 0.0
    %255 = vmatprep.subr.mxu0 0.0
    %256 = vmatpush1.xpose.msra.mxu0 0.0
    %257 = vmatprep.subr.mxu0 0.0
    %258 = vmatpush1.xpose.msra.mxu0 0.0
    %259 = vmatprep.subr.mxu0 0.0
    %260 = vmatpush1.xpose.msra.mxu0 0.0
    %261 = vmatprep.subr.mxu0 0.0
    %262 = vmatpush1.xpose.msra.mxu0 0.0
    %263 = vmatprep.subr.mxu0 0.0
    %264 = vmatpush1.xpose.msra.mxu0 0.0
    %265 = vmatprep.subr.mxu0 0.0
    %266 = vmatpush1.xpose.msra.mxu0 0.0
    %267 = vmatprep.subr.mxu0 0.0
    %268 = vmatpush1.xpose.msra.mxu0 0.0
    %269 = vmatprep.subr.mxu0 0.0
    %270 = vmatpush1.xpose.msra.mxu0 0.0
    %271 = vmatprep.subr.mxu0 0.0
    %272 = vmatpush1.xpose.msra.mxu0 0.0
    %273 = vmatprep.subr.mxu0 0.0
    %274 = vmatpush1.xpose.msra.mxu0 0.0
    %275 = vmatprep.subr.mxu0 0.0
    %276 = vmatpush1.xpose.msra.mxu0 0.0
    %277 = vmatprep.subr.mxu0 0.0
    %278 = vmatpush1.xpose.msra.mxu0 0.0
    %279 = vmatprep.subr.mxu0 0.0
    %280 = vmatpush1.xpose.msra.mxu0 0.0
    %281 = vmatprep.subr.mxu0 0.0
    %282 = vmatpush1.xpose.msra.mxu0 0.0
    %283 = vmatprep.subr.mxu0 0.0
    %284 = vmatpush1.xpose.msra.mxu0 0.0
    %285 = vmatprep.subr.mxu0 0.0
    %286 = vmatpush1.xpose.msra.mxu0 0.0
    %287 = vmatprep.subr.mxu0 0.0
    %288 = vmatpush1.xpose.msra.mxu0 0.0
    %289 = vmatprep.subr.mxu0 0.0
    %290 = vmatpush1.xpose.msra.mxu0 0.0
    %291 = vmatprep.subr.mxu0 0.0
    %292 = vmatpush1.xpose.msra.mxu0 0.0
    %293 = vmatprep.subr.mxu0 0.0
    %294 = vmatpush1.xpose.msra.mxu0 0.0
    %295 = vmatprep.subr.mxu0 0.0
    %296 = vmatpush1.xpose.msra.mxu0 0.0
    %297 = vmatprep.subr.mxu0 0.0
    %298 = vmatpush1.xpose.msra.mxu0 0.0
    %299 = vmatprep.subr.mxu0 0.0
    %300 = vmatpush1.xpose.msra.mxu0 0.0
    %301 = vmatprep.subr.mxu0 0.0
    %302 = vmatpush1.xpose.msra.mxu0 0.0
    %303 = vmatprep.mubr.f32.mxu0 0.0
    %304 = vmatmul.mubr.f32.gmra.mrb[0].mxu0 %v228
    %v305 = vpop.f32.mrb[0].mxu0
    %v306 = vadd.f32 %v238, %v305
    %v307 = vpop.f32.mrb[0].mxu0
    %308 = vdwg.mxu0
    %vm309 = vcmask 57344
    %310 = vst.msk [vmem:[#allocation9] sm:$0x1] %vm309, %v306
    // Predicated region
    $region42: #{tpu_custom_call.1} parent=1 // pred_check
      _
    $region43: #{tpu_custom_call.1} parent=1 // pred_check_branch
      %312 = sbr.rel (0) target = $region45
    $region44: #{tpu_custom_call.1} parent=1 // pred_region
      %s314 = ssub.s32 16, 16
      %315 = vsyncadd [#allocation5], %s314
      %s317 = sshll.u32 [#allocation9], 4
      %s318 = int_to_ptr.vmem [resolvable:$true] %s317
      %320 = dma.vmem_to_hbm [thread:$0]  %s318, 16, %s7, [#allocation5]
    $region45: #{tpu_custom_call.1} parent=1 // pred_fallthru
      _
    // Predicated region
    $region46: #{tpu_custom_call.1} parent=1 // pred_check
      _
    $region47: #{tpu_custom_call.1} parent=1 // pred_check_branch
      %322 = sbr.rel (0) target = $region49
    $region48: #{tpu_custom_call.1} parent=1 // pred_region
      %323 = dma.done [#allocation5], 16
    $region49: #{tpu_custom_call.1} parent=1 // pred_fallthru
      _
    %324 = vsyncpa [#allocation4], 1
    %325 = vsyncpa [#allocation7], 1
    %326 = vsyncpa [#allocation5], 1

</llo_original>
